<compile_context>
chip_gen: v6e
topology: v6e:2x2x1
jax: 0.10.0
libtpu: 0.0.40
codegen_flags: <defaults>
</compile_context>

<pallas_src>
import functools

import jax
import jax.numpy as jnp
from jax.experimental import pallas as pl
from jax.experimental.pallas import tpu as pltpu

_LN_EPS = 1e-5


def _round_up(x, m):
    return (x + m - 1) // m * m


@functools.lru_cache(maxsize=None)
def _device_vmem_bytes():
    """Physical VMEM of the current TPU generation (fallback: 64 MiB, v7x-safe)."""
    try:
        cap = int(getattr(pltpu.get_tpu_info(), "vmem_capacity_bytes", 0))
        if cap > 0:
            return cap
    except Exception:
        pass
    return 64 * 1024 * 1024


def _pick_tm(m, tm_request, sub):
    """Row tile: bounded padding waste, >=2 grid points for megacore when possible."""
    m_min = _round_up(max(m, 1), sub)
    cands = [c for c in (1024, 512, 256, 128, 64, 32, 16, 8)
             if c % sub == 0 and c <= max(tm_request, sub)]
    if not cands:
        cands = [sub]
    for c in cands:                                   # descending
        m_pad = _round_up(m, c)
        waste = (m_pad - m) / max(m, 1)
        n_tiles = m_pad // c
        ok_waste = (waste <= 0.30) or (m_pad == m_min)
        ok_split = (n_tiles >= 2) or (m_min <= sub)   # 2 TCs on v7x want >=2 tiles
        if ok_waste and ok_split:
            return c, m_pad
    c = cands[-1]
    return c, _round_up(m, c)


def _layernorm_relu(y, p_ref, n_real, out_dtype):
    """LayerNorm over the real last-dim width `n_real`, then ReLU.

    `y` may carry zero-padded lanes beyond n_real. The mean uses the padded sum (padded
    lanes are exactly 0), and the variance uses the shifted two-pass form with padded
    lanes masked out of the centered values, so the moments are exact and stable.
    """
    n_pad = y.shape[-1]
    inv_n = 1.0 / float(n_real)
    mean = jnp.sum(y, axis=-1, keepdims=True) * inv_n
    centered = y - mean
    if n_pad != n_real:
        lane = jax.lax.broadcasted_iota(jnp.int32, y.shape, y.ndim - 1)
        centered = jnp.where(lane < n_real, centered, 0.0)
    var = jnp.sum(centered * centered, axis=-1, keepdims=True) * inv_n
    out = centered * jax.lax.rsqrt(var + _LN_EPS) * p_ref[1:2, :] + p_ref[2:3, :]
    return jnp.maximum(out, 0.0).astype(out_dtype)


def _adapter_kernel_resident(x_ref, w_ref, p_ref, o_ref, *, n_real):
    # Whole weight resident in VMEM: single matmul + fused epilogue.
    y = jnp.dot(x_ref[...], w_ref[...], preferred_element_type=jnp.float32)
    y = y + p_ref[0:1, :]                      # bias (padded lanes stay 0)
    o_ref[...] = _layernorm_relu(y, p_ref, n_real, o_ref.dtype)


def _adapter_kernel_ktiled_inplace(x_ref, w_ref, p_ref, o_ref, *, n_real):
    # Weight streamed in (tk, Np) slabs; f32 output block is resident across the
    # (arbitrary) K axis, so accumulate directly into it — no scratch accumulator.
    k = pl.program_id(1)

    @pl.when(k == 0)
    def _():
        o_ref[...] = jnp.zeros_like(o_ref)

    o_ref[...] += jnp.dot(x_ref[...], w_ref[...], preferred_element_type=jnp.float32)

    @pl.when(k == pl.num_programs(1) - 1)
    def _():
        y = o_ref[...] + p_ref[0:1, :]
        o_ref[...] = _layernorm_relu(y, p_ref, n_real, o_ref.dtype)


def _adapter_kernel_ktiled_scratch(x_ref, w_ref, p_ref, o_ref, acc_ref, *, n_real):
    # Same as above but with a separate f32 accumulator (non-f32 output dtypes).
    k = pl.program_id(1)

    @pl.when(k == 0)
    def _():
        acc_ref[...] = jnp.zeros_like(acc_ref)

    acc_ref[...] += jnp.dot(x_ref[...], w_ref[...], preferred_element_type=jnp.float32)

    @pl.when(k == pl.num_programs(1) - 1)
    def _():
        y = acc_ref[...] + p_ref[0:1, :]
        o_ref[...] = _layernorm_relu(y, p_ref, n_real, o_ref.dtype)


def _nonlinear_adapter_impl(x, weight, bias, gamma, beta, *, tm=None, tk=None,
                            compute_dtype=None):
    """Fused Linear -> LayerNorm -> ReLU (forward of NonLinearAdapter).

    x:      (..., K) activations (leading dims flattened to rows).
    weight: (K, N) linear weight (transposed from torch's (N, K)).
    bias, gamma, beta: (N,).
    tm:     target row tile; None -> 1024 on 128 MiB-VMEM parts, 512 on v7x.
    tk:     None -> auto (resident weight if it fits ~70% of device VMEM, else stream
            in 1024-wide K slabs); 0 -> force resident; >0 -> force K-tiling.
    compute_dtype: e.g. jnp.bfloat16 to stream x/W at half the HBM bytes and the MXU's
            native bf16 rate (helps on v5e/v6e/v7x for mem-bound shapes); accumulation
            and the LN/ReLU epilogue stay f32.
    """
    orig_shape = x.shape
    K = orig_shape[-1]
    x = x.reshape(-1, K)
    M = x.shape[0]
    Kw, N = weight.shape
    if Kw != K:
        raise ValueError("weight must be (in_dim, out_dim)")

    out_dtype = x.dtype
    io_dtype = jnp.dtype(x.dtype if compute_dtype is None else compute_dtype)
    io_bpe = io_dtype.itemsize
    out_bpe = jnp.dtype(out_dtype).itemsize
    sub = {4: 8, 2: 16, 1: 32}.get(io_bpe, 8)          # sublane multiple per dtype

    vmem_cap = _device_vmem_bytes()
    if tm is None:
        tm = 1024 if vmem_cap >= 96 * 1024 * 1024 else 512

    # ---- padded / tiled geometry -------------------------------------------
    n_pad = _round_up(N, 128)                          # lane-dense output stores
    tm_eff, m_pad = _pick_tm(M, tm, sub)
    params_bytes = 2 * 3 * n_pad * 4

    # ---- resident-weight vs K-tiled decision (dtype + generation aware) ----
    if tk is None:
        resident_est = (2 * K * n_pad * io_bpe         # weight (double-buffered)
                        + 2 * tm_eff * K * io_bpe      # x tiles
                        + 2 * tm_eff * n_pad * out_bpe  # output tiles
                        + params_bytes)
        tk = 0 if resident_est <= int(0.7 * vmem_cap) else 1024

    if tk and tk > 0:
        tk_eff = _round_up(min(tk, K), 128)

        def _est(tk_e):
            e = (2 * tm_eff * tk_e * io_bpe + 2 * tk_e * n_pad * io_bpe
                 + 2 * tm_eff * n_pad * out_bpe + params_bytes)
            if out_dtype != jnp.float32:
                e += tm_eff * n_pad * 4                # f32 accumulator scratch
            return e

        while tk_eff > 128 and _est(tk_eff) > int(0.8 * vmem_cap):
            tk_eff = max(128, _round_up(tk_eff // 2, 128))
        k_pad = _round_up(K, tk_eff)
        vmem_est = _est(tk_eff)
    else:
        tk_eff = 0
        k_pad = K                                      # full-K block == array dim
        vmem_est = (2 * K * n_pad * io_bpe + 2 * tm_eff * K * io_bpe
                    + 2 * tm_eff * n_pad * out_bpe + params_bytes)

    vmem_limit = int(min(max(1.3 * vmem_est, 16 * 1024 * 1024), 0.9 * vmem_cap))

    # ---- pad operands (zero padding keeps the math exact; see _layernorm_relu)
    # NOTE: callers that hold the weight fixed can pre-pad/cast it once outside and
    # pass aligned shapes; _pad2d is then a no-op.
    def _pad2d(a, rows, cols, dtype):
        a = a.astype(dtype)
        if a.shape == (rows, cols):
            return a
        return jnp.zeros((rows, cols), dtype).at[:a.shape[0], :a.shape[1]].set(a)

    x_p = _pad2d(x, m_pad, k_pad, io_dtype)
    w_p = _pad2d(weight, k_pad, n_pad, io_dtype)

    params = jnp.zeros((3, n_pad), jnp.float32)
    params = params.at[0, :N].set(bias.astype(jnp.float32))
    params = params.at[1, :N].set(gamma.astype(jnp.float32))
    params = params.at[2, :N].set(beta.astype(jnp.float32))

    # ---- cost hint for the XLA scheduler ------------------------------------
    w_reads = (m_pad // tm_eff) if tk_eff else 1       # streamed weight re-read per M tile
    cost = pl.CostEstimate(
        flops=int(2 * m_pad * k_pad * n_pad),
        transcendentals=int(m_pad),
        bytes_accessed=int(m_pad * k_pad * io_bpe + w_reads * k_pad * n_pad * io_bpe
                           + m_pad * n_pad * out_bpe + 3 * n_pad * 4),
    )

    # ---- build the pallas_call ----------------------------------------------
    if tk_eff:
        grid = (m_pad // tm_eff, k_pad // tk_eff)
        in_specs = [
            pl.BlockSpec((tm_eff, tk_eff), lambda i, k: (i, k)),
            pl.BlockSpec((tk_eff, n_pad), lambda i, k: (k, 0)),
            pl.BlockSpec((3, n_pad), lambda i, k: (0, 0)),
        ]
        out_specs = pl.BlockSpec((tm_eff, n_pad), lambda i, k: (i, 0))
        if out_dtype == jnp.float32:
            scratch = []
            kernel = functools.partial(_adapter_kernel_ktiled_inplace, n_real=N)
        else:
            scratch = [pltpu.VMEM((tm_eff, n_pad), jnp.float32)]
            kernel = functools.partial(_adapter_kernel_ktiled_scratch, n_real=N)
        dim_sem = ("parallel", "arbitrary")            # M split across TCs; K reduction
    else:
        grid = (m_pad // tm_eff,)
        in_specs = [
            pl.BlockSpec((tm_eff, K), lambda i: (i, 0)),
            pl.BlockSpec((K, n_pad), lambda i: (0, 0)),
            pl.BlockSpec((3, n_pad), lambda i: (0, 0)),
        ]
        out_specs = pl.BlockSpec((tm_eff, n_pad), lambda i: (i, 0))
        scratch = []
        kernel = functools.partial(_adapter_kernel_resident, n_real=N)
        dim_sem = ("parallel",)

    out = pl.pallas_call(
        kernel,
        out_shape=jax.ShapeDtypeStruct((m_pad, n_pad), out_dtype),
        grid_spec=pltpu.PrefetchScalarGridSpec(
            num_scalar_prefetch=0,
            grid=grid,
            in_specs=in_specs,
            out_specs=out_specs,
            scratch_shapes=scratch,
        ),
        compiler_params=pltpu.CompilerParams(
            dimension_semantics=dim_sem,
            vmem_limit_bytes=vmem_limit,
        ),
        cost_estimate=cost,
    )(x_p, w_p, params)

    # Under jit this slice fuses with the consumer (no separate HBM round trip when the
    # caller keeps using the result inside the same jit region).
    return out[:M, :N].reshape(orig_shape[:-1] + (N,))


# Jitted entry point: padding, the pallas_call and the trailing slice compile together;
# no host sync or eager fallback inside.
nonlinear_adapter = jax.jit(_nonlinear_adapter_impl,
                            static_argnames=("tm", "tk", "compute_dtype"))


# --------------------------- reference & self-test ------------------------------------
def _reference(x, weight, bias, gamma, beta):
    y = x @ weight + bias
    mean = jnp.mean(y, axis=-1, keepdims=True)
    var = jnp.mean((y - mean) ** 2, axis=-1, keepdims=True)
    y = (y - mean) / jnp.sqrt(var + _LN_EPS) * gamma + beta
    return jnp.maximum(y, 0.0)


def _make_params(key, in_dim, out_dim):
    kw, kb = jax.random.split(key)
    bound = 1.0 / jnp.sqrt(in_dim)
    weight = jax.random.uniform(kw, (in_dim, out_dim), jnp.float32, -bound, bound)
    bias = jax.random.uniform(kb, (out_dim,), jnp.float32, -bound, bound)
    gamma = jnp.ones((out_dim,), jnp.float32)   # LayerNorm weight init
    beta = jnp.zeros((out_dim,), jnp.float32)   # LayerNorm bias init
    return weight, bias, gamma, beta


if __name__ == "__main__":
    key = jax.random.PRNGKey(0)
    k1, k2, k3, k4 = jax.random.split(key, 4)

    # Case 1: small adapter — resident-weight path, N padded 64 -> 128 lanes.
    batch, in_dim, out_dim = 8, 32, 64
    x = jax.random.normal(k1, (batch, in_dim), jnp.float32)
    weight, bias, gamma, beta = _make_params(k2, in_dim, out_dim)
    out = jax.block_until_ready(nonlinear_adapter(x, weight, bias, gamma, beta))
    ref = _reference(x, weight, bias, gamma, beta)
    assert out.shape == (batch, out_dim)
    assert jnp.allclose(out, ref, atol=1e-4, rtol=1e-4), \
        float(jnp.max(jnp.abs(out - ref)))

    # Case 2: K-tiled path (forced small slabs), f32 output -> accumulate-in-output,
    # with M, K and N all requiring padding.
    batch, in_dim, out_dim = 20, 200, 96
    x = jax.random.normal(k3, (batch, in_dim), jnp.float32)
    weight, bias, gamma, beta = _make_params(k4, in_dim, out_dim)
    out = jax.block_until_ready(
        nonlinear_adapter(x, weight, bias, gamma, beta, tm=256, tk=128))
    ref = _reference(x, weight, bias, gamma, beta)
    assert out.shape == (batch, out_dim)
    assert jnp.allclose(out, ref, atol=1e-4, rtol=1e-4), \
        float(jnp.max(jnp.abs(out - ref)))

    # Case 3: bf16 activations — K-tiled path with the f32 scratch accumulator
    # (non-f32 output dtype); compare against a bf16-weight reference.
    x_bf16 = x.astype(jnp.bfloat16)
    out = jax.block_until_ready(
        nonlinear_adapter(x_bf16, weight, bias, gamma, beta, tk=128))
    ref = _reference(x_bf16.astype(jnp.float32),
                     weight.astype(jnp.bfloat16).astype(jnp.float32),
                     bias, gamma, beta)
    assert out.shape == (batch, out_dim)
    assert out.dtype == jnp.bfloat16
    assert jnp.allclose(out.astype(jnp.float32), ref, atol=3e-2, rtol=3e-2), \
        float(jnp.max(jnp.abs(out.astype(jnp.float32) - ref)))

    print("KERNEL_OK")
</pallas_src>

<mosaic_0001>
module attributes {stable_mosaic.version = 11 : i64} {
  func.func @_adapter_kernel_resident(%arg0: i32, %arg1: memref<8x32xf32, #tpu.memory_space<vmem>>, %arg2: memref<32x128xf32, #tpu.memory_space<vmem>>, %arg3: memref<3x128xf32, #tpu.memory_space<vmem>>, %arg4: memref<8x128xf32, #tpu.memory_space<vmem>>) attributes {dimension_semantics = [#tpu.dimension_semantics<parallel>], iteration_bounds = array<i64: 1>, scalar_prefetch = 0 : i64, scratch_operands = 0 : i64, tpu.core_type = #tpu.core_type<tc>, window_params = [{transform_indices = @transform_0, window_bounds = array<i64: 8, 32>}, {pipeline_mode = #tpu.pipeline_mode<synchronous>, transform_indices = @transform_1, window_bounds = array<i64: 32, 128>}, {pipeline_mode = #tpu.pipeline_mode<synchronous>, transform_indices = @transform_2, window_bounds = array<i64: 3, 128>}, {transform_indices = @transform_3, window_bounds = array<i64: 8, 128>}]} {
    %c0 = arith.constant 0 : index
    %c0_0 = arith.constant 0 : index
    %0 = vector.load %arg1[%c0, %c0_0] : memref<8x32xf32, #tpu.memory_space<vmem>>, vector<8x32xf32>
    %c0_1 = arith.constant 0 : index
    %c0_2 = arith.constant 0 : index
    %1 = vector.load %arg2[%c0_1, %c0_2] : memref<32x128xf32, #tpu.memory_space<vmem>>, vector<32x128xf32>
    %cst = arith.constant dense<0.000000e+00> : vector<8x128xf32>
    %2 = tpu.matmul %0, %1, %cst {dimension_numbers = #tpu.dot_dimension_numbers<[1], [0], [0], [1], [0, 0, 1, 1], [], []>} : vector<8x32xf32>, vector<32x128xf32>, vector<8x128xf32> -> vector<8x128xf32>
    %c0_3 = arith.constant 0 : index
    %c0_4 = arith.constant 0 : index
    %3 = vector.load %arg3[%c0_3, %c0_4] : memref<3x128xf32, #tpu.memory_space<vmem>>, vector<1x128xf32>
    %4 = vector.broadcast %3 : vector<1x128xf32> to vector<8x128xf32>
    %5 = arith.addf %2, %4 : vector<8x128xf32>
    %cst_5 = arith.constant dense<0.000000e+00> : vector<8xf32>
    %6 = vector.multi_reduction <add>, %5, %cst_5 [1] : vector<8x128xf32> to vector<8xf32>
    %7 = vector.shape_cast %6 : vector<8xf32> to vector<8x1xf32>
    %cst_6 = arith.constant 1.562500e-02 : f32
    %8 = vector.broadcast %cst_6 : f32 to vector<8x1xf32>
    %9 = arith.mulf %7, %8 : vector<8x1xf32>
    %10 = vector.broadcast %9 : vector<8x1xf32> to vector<8x128xf32>
    %11 = arith.subf %5, %10 : vector<8x128xf32>
    %12 = tpu.iota {dimensions = array<i32: 1>} : vector<8x128xi32>
    %c64_i32 = arith.constant 64 : i32
    %13 = vector.broadcast %c64_i32 : i32 to vector<8x128xi32>
    %14 = arith.cmpi slt, %12, %13 : vector<8x128xi32>
    %cst_7 = arith.constant 0.000000e+00 : f32
    %15 = vector.broadcast %cst_7 : f32 to vector<8x128xf32>
    %16 = arith.select %14, %11, %15 : vector<8x128xi1>, vector<8x128xf32>
    %17 = arith.mulf %16, %16 : vector<8x128xf32>
    %cst_8 = arith.constant dense<0.000000e+00> : vector<8xf32>
    %18 = vector.multi_reduction <add>, %17, %cst_8 [1] : vector<8x128xf32> to vector<8xf32>
    %19 = vector.shape_cast %18 : vector<8xf32> to vector<8x1xf32>
    %cst_9 = arith.constant 1.562500e-02 : f32
    %20 = vector.broadcast %cst_9 : f32 to vector<8x1xf32>
    %21 = arith.mulf %19, %20 : vector<8x1xf32>
    %cst_10 = arith.constant 9.99999974E-6 : f32
    %22 = vector.broadcast %cst_10 : f32 to vector<8x1xf32>
    %23 = arith.addf %21, %22 : vector<8x1xf32>
    %24 = math.rsqrt %23 : vector<8x1xf32>
    %25 = vector.broadcast %24 : vector<8x1xf32> to vector<8x128xf32>
    %26 = arith.mulf %16, %25 : vector<8x128xf32>
    %c1 = arith.constant 1 : index
    %c0_11 = arith.constant 0 : index
    %27 = vector.load %arg3[%c1, %c0_11] : memref<3x128xf32, #tpu.memory_space<vmem>>, vector<1x128xf32>
    %28 = vector.broadcast %27 : vector<1x128xf32> to vector<8x128xf32>
    %29 = arith.mulf %26, %28 : vector<8x128xf32>
    %c2 = arith.constant 2 : index
    %c0_12 = arith.constant 0 : index
    %30 = vector.load %arg3[%c2, %c0_12] : memref<3x128xf32, #tpu.memory_space<vmem>>, vector<1x128xf32>
    %31 = vector.broadcast %30 : vector<1x128xf32> to vector<8x128xf32>
    %32 = arith.addf %29, %31 : vector<8x128xf32>
    %cst_13 = arith.constant 0.000000e+00 : f32
    %33 = vector.broadcast %cst_13 : f32 to vector<8x128xf32>
    %34 = arith.maximumf %32, %33 : vector<8x128xf32>
    %c0_14 = arith.constant 0 : index
    %c0_15 = arith.constant 0 : index
    %35 = vector.load %arg4[%c0_14, %c0_15] : memref<8x128xf32, #tpu.memory_space<vmem>>, vector<8x128xf32>
    tpu.vector_store %arg4[%c0_14, %c0_15], %34 {strides = array<i32>} : memref<8x128xf32, #tpu.memory_space<vmem>>, vector<8x128xf32>,
    return
  }
  func.func @transform_0(%arg0: i32) -> (i32, i32) {
    %c0_i32 = arith.constant 0 : i32
    %c0_i32_0 = arith.constant 0 : i32
    return %arg0, %c0_i32 : i32, i32
  }
  func.func @transform_1(%arg0: i32) -> (i32, i32) {
    %c0_i32 = arith.constant 0 : i32
    %c0_i32_0 = arith.constant 0 : i32
    %c0_i32_1 = arith.constant 0 : i32
    return %c0_i32, %c0_i32_0 : i32, i32
  }
  func.func @transform_2(%arg0: i32) -> (i32, i32) {
    %c0_i32 = arith.constant 0 : i32
    %c0_i32_0 = arith.constant 0 : i32
    %c0_i32_1 = arith.constant 0 : i32
    return %c0_i32, %c0_i32_0 : i32, i32
  }
  func.func @transform_3(%arg0: i32) -> (i32, i32) {
    %c0_i32 = arith.constant 0 : i32
    %c0_i32_0 = arith.constant 0 : i32
    return %arg0, %c0_i32 : i32, i32
  }
}

</mosaic_0001>

<llo_original>
// kernel: _nonlinear_adapter_impl.1
$region0: #{_nonlinear_adapter_impl.1}
  #allocation0 [shape = 'u32[]', space=smem, size = 0x4, offset = 0x4, fixed_abs, tag = 'smem constant byte address 0x4 - core index']
  #allocation1 [shape = 'u32[144,128]{1,0:T(1,128)}', space=vmem, size = 0x12000, scoped, tag = 'internal scratch']
  %s0 = inlined_call_operand.vmem [shape: f32[8,32], index: 0, kind: input, shape index: {}]
  %s1 = inlined_call_operand.vmem [shape: f32[32,128], index: 1, kind: input, shape index: {}]
  %s2 = inlined_call_operand.vmem [shape: f32[3,128], index: 2, kind: input, shape index: {}]
  %s3 = inlined_call_operand.hbm [shape: f32[8,128], index: 3, kind: output, shape index: {}]
  %s4 = sld [smem:[#allocation0]]
  $region22: #{_nonlinear_adapter_impl.1} parent=0
    _
  %s6 = ssub.s32 1, %s4
  %s7 = scalar_select 0, %s6, %s4
  $region1: #{_nonlinear_adapter_impl.1} parent=0
    #allocation2 [shape = 'u8[4096]{0}', space=vmem, size = 0x1000, scoped, tag = 'output window, operand 0, single buffered']
    #allocation3 [shape = 's32[1]{0}', space=sflag, size = 0x4, scoped, tag = 'scoped memory for _nonlinear_adapter_impl.1']
    %8 = vsyncpa [#allocation3], 0
    // Predicated region
    $region2: #{_nonlinear_adapter_impl.1} parent=1 // pred_check
      _
    $region3: #{_nonlinear_adapter_impl.1} parent=1 // pred_check_branch
      %10 = sbr.rel (0) target = $region5
    $region4: #{_nonlinear_adapter_impl.1} parent=1 // pred_region
      _
    $region5: #{_nonlinear_adapter_impl.1} parent=1 // pred_fallthru
      _
    // Predicated region
    $region6: #{_nonlinear_adapter_impl.1} parent=1 // pred_check
      _
    $region7: #{_nonlinear_adapter_impl.1} parent=1 // pred_check_branch
      %12 = sbr.rel (0) target = $region9
    $region8: #{_nonlinear_adapter_impl.1} parent=1 // pred_region
      _
    $region9: #{_nonlinear_adapter_impl.1} parent=1 // pred_fallthru
      _
    // Predicated region
    $region10: #{_nonlinear_adapter_impl.1} parent=1 // pred_check
      _
    $region11: #{_nonlinear_adapter_impl.1} parent=1 // pred_check_branch
      %14 = sbr.rel (0) target = $region13
    $region12: #{_nonlinear_adapter_impl.1} parent=1 // pred_region
      _
    $region13: #{_nonlinear_adapter_impl.1} parent=1 // pred_fallthru
      _
    %v15 = vld [vmem:[%s0] sm:$0xff]
    %v16 = vld [vmem:[%s1] sm:$0xff]
    %v17 = vld [vmem:[%s1 + $0x8] sm:$0xff]
    %v18 = vld [vmem:[%s1 + $0x10] sm:$0xff]
    %v19 = vld [vmem:[%s1 + $0x18] sm:$0xff]
    %v20 = vld [vmem:[%s2] sm:$0x1]
    %v21 = vlaneseq
    %v22 = vshrl.u32 %v21, 7
    %v23 = vsub.s32 0, %v22
    %v24 = vrot.slane %v20, %v23
    %vm25 = vcmask 261120
    %v27 = vsel %vm25, %v15, 0
    %29 = vmatprep.subr.mxu0 0.0
    %30 = vmatpush1.msra.mxu0 0.0
    %31 = vmatprep.subr.mxu0 0.0
    %32 = vmatpush1.msra.mxu0 0.0
    %33 = vmatprep.subr.mxu0 0.0
    %34 = vmatpush1.msra.mxu0 0.0
    %35 = vmatprep.subr.mxu0 0.0
    %36 = vmatpush1.msra.mxu0 0.0
    %37 = vmatprep.subr.mxu0 0.0
    %38 = vmatpush1.msra.mxu0 0.0
    %39 = vmatprep.subr.mxu0 0.0
    %40 = vmatpush1.msra.mxu0 0.0
    %41 = vmatprep.subr.mxu0 0.0
    %42 = vmatpush1.msra.mxu0 0.0
    %43 = vmatprep.subr.mxu0 0.0
    %44 = vmatpush1.msra.mxu0 0.0
    %45 = vmatprep.subr.mxu0 0.0
    %46 = vmatpush1.msra.mxu0 0.0
    %47 = vmatprep.subr.mxu0 0.0
    %48 = vmatpush1.msra.mxu0 0.0
    %49 = vmatprep.subr.mxu0 0.0
    %50 = vmatpush1.msra.mxu0 0.0
    %51 = vmatprep.subr.mxu0 0.0
    %52 = vmatpush1.msra.mxu0 0.0
    %53 = vmatprep.subr.mxu0 0.0
    %54 = vmatpush1.msra.mxu0 %v19
    %55 = vmatprep.subr.mxu0 0.0
    %56 = vmatpush1.msra.mxu0 %v18
    %57 = vmatprep.subr.mxu0 0.0
    %58 = vmatpush1.msra.mxu0 %v17
    %59 = vmatprep.subr.mxu0 0.0
    %60 = vmatpush1.msra.mxu0 %v16
    %61 = vmatprep.subr.mxu0 0.0
    %62 = vmatpush2.msra.mxu0 0.0
    %63 = vmatprep.subr.mxu0 0.0
    %64 = vmatpush2.msra.mxu0 0.0
    %65 = vmatprep.subr.mxu0 0.0
    %66 = vmatpush2.msra.mxu0 0.0
    %67 = vmatprep.subr.mxu0 0.0
    %68 = vmatpush2.msra.mxu0 0.0
    %69 = vmatprep.subr.mxu0 0.0
    %70 = vmatpush2.msra.mxu0 0.0
    %71 = vmatprep.subr.mxu0 0.0
    %72 = vmatpush2.msra.mxu0 0.0
    %73 = vmatprep.subr.mxu0 0.0
    %74 = vmatpush2.msra.mxu0 0.0
    %75 = vmatprep.subr.mxu0 0.0
    %76 = vmatpush2.msra.mxu0 0.0
    %77 = vmatprep.subr.mxu0 0.0
    %78 = vmatpush2.msra.mxu0 0.0
    %79 = vmatprep.subr.mxu0 0.0
    %80 = vmatpush2.msra.mxu0 0.0
    %81 = vmatprep.subr.mxu0 0.0
    %82 = vmatpush2.msra.mxu0 0.0
    %83 = vmatprep.subr.mxu0 0.0
    %84 = vmatpush2.msra.mxu0 0.0
    %85 = vmatprep.subr.mxu0 0.0
    %86 = vmatpush2.msra.mxu0 0.0
    %87 = vmatprep.subr.mxu0 0.0
    %88 = vmatpush2.msra.mxu0 0.0
    %89 = vmatprep.subr.mxu0 0.0
    %90 = vmatpush2.msra.mxu0 0.0
    %91 = vmatprep.subr.mxu0 0.0
    %92 = vmatpush2.msra.mxu0 0.0
    %93 = vmatprep.mubr.f32.mxu0 0.0
    %94 = vmatmul.mubr.f32.gmra.mxu0 %v27
    %v95 = vpop.f32.mrf.mxu0
    %v96 = vadd.f32 %v24, %v95
    %v97 = vpop.f32.mrf.mxu0
    %98 = vdwg.mxu0
    %99 = vadd.xlane.f32.xlu0 %v96
    %v100 = vpop.xlane.xlu0 %99
    %v101 = vmul.f32 %v100, 0.015625
    %v102 = vsub.f32 %v96, %v101
    %v103 = vlaneseq
    %v104 = vand.u32 %v103, 127
    %vm105 = vcmp.lt.s32.totalorder %v104, 64
    %v106 = vsel %vm105, %v102, 0.0
    %v107 = vmul.f32 %v106, %v106
    %108 = vadd.xlane.f32.xlu0 %v107
    %v109 = vpop.xlane.xlu0 %108
    %v110 = vmul.f32 %v109, 0.015625
    %v111 = vadd.f32 %v110, 1e-05
    %v112 = vrsqrt.pop %v111
    %v113 = vmul.f32 %v106, %v112
    %v114 = vld [vmem:[%s2 + $0x1] sm:$0x1]
    %v115 = vlaneseq
    %v116 = vshrl.u32 %v115, 7
    %v117 = vsub.s32 0, %v116
    %v118 = vrot.slane %v114, %v117
    %v119 = vmul.f32 %v113, %v118
    %v120 = vld [vmem:[%s2 + $0x2] sm:$0x1]
    %v121 = vlaneseq
    %v122 = vshrl.u32 %v121, 7
    %v123 = vsub.s32 0, %v122
    %v124 = vrot.slane %v120, %v123
    %v125 = vadd.f32 %v119, %v124
    %v126 = vmax.f32 %v125, 0.0
    %127 = vst [vmem:[#allocation2] sm:$0xff] %v126
    // Predicated region
    $region14: #{_nonlinear_adapter_impl.1} parent=1 // pred_check
      _
    $region15: #{_nonlinear_adapter_impl.1} parent=1 // pred_check_branch
      %129 = sbr.rel (0) target = $region17
    $region16: #{_nonlinear_adapter_impl.1} parent=1 // pred_region
      %s131 = ssub.s32 128, 128
      %132 = vsyncadd [#allocation3], %s131
      %s134 = sshll.u32 [#allocation2], 4
      %s135 = int_to_ptr.vmem [resolvable:$true] %s134
      %137 = dma.vmem_to_hbm [thread:$0]  %s135, 128, %s3, [#allocation3]
    $region17: #{_nonlinear_adapter_impl.1} parent=1 // pred_fallthru
      _
    // Predicated region
    $region18: #{_nonlinear_adapter_impl.1} parent=1 // pred_check
      _
    $region19: #{_nonlinear_adapter_impl.1} parent=1 // pred_check_branch
      %139 = sbr.rel (0) target = $region21
    $region20: #{_nonlinear_adapter_impl.1} parent=1 // pred_region
      %140 = dma.done [#allocation3], 128
    $region21: #{_nonlinear_adapter_impl.1} parent=1 // pred_fallthru
      _
    %141 = vsyncpa [#allocation3], 1

</llo_original>
